<compile_context>
chip_gen: v7x
topology: tpu7x:2x2x1
jax: 0.10.0
libtpu: 0.0.40
codegen_flags: <defaults>
</compile_context>

<pallas_src>
import functools
import math

import numpy as np
import jax
import jax.numpy as jnp
from jax import lax
from jax.experimental import pallas as pl
from jax.experimental.pallas import tpu as pltpu

_INV_SQRT2 = 1.0 / math.sqrt(2.0)


def _round_up(x, m):
    return ((x + m - 1) // m) * m


def _cdiv(a, b):
    return (a + b - 1) // b


def _choose_tm(M, tm_req):
    """Row tile: multiple of 128 for large M; >=2 grid steps when M allows so
    megacore sharding and DMA/compute double-buffering both have work."""
    if M <= 256:
        return _round_up(max(M, 8), 8)            # single small tile, minimal pad
    tm_req = max(128, (tm_req // 128) * 128)
    tm = min(tm_req, _round_up(_cdiv(M, 2), 128))
    return max(128, tm)


def _choose_tn(I, target):
    """N-chunk width inside the kernel: multiple of 128 that divides I."""
    if I <= target or I % 128 != 0:
        return I
    tn = (min(target, I) // 128) * 128
    while tn > 128 and I % tn != 0:
        tn -= 128
    return tn if I % tn == 0 else I


def _intermediate_kernel(x_ref, w_ref, b_ref, o_ref, *, tn, compute_dtype,
                         approximate_gelu):
    # x_ref: [tm, H] (input dtype), w_ref: [H, I] (MXU dtype),
    # b_ref: [1, I] (f32), o_ref: [tm, I] (output dtype).
    x = x_ref[...]
    if compute_dtype is not None and x.dtype != compute_dtype:
        x = x.astype(compute_dtype)               # in-kernel cast: no extra HBM pass
    n_chunks = o_ref.shape[-1] // tn
    # Static loop over N-chunks: independent chunks let the scheduler overlap
    # MXU matmul pushes of chunk j+1 with the VPU/EUP GELU of chunk j.
    for j in range(n_chunks):
        sl = slice(j * tn, (j + 1) * tn)          # static, 128-aligned slice
        y = jnp.dot(x, w_ref[:, sl], preferred_element_type=jnp.float32)
        y = y + b_ref[:, sl]                      # bias already f32
        if approximate_gelu:
            # Opt-in tanh-approx GELU (transcendental -> EUP slot on v6e/v7x).
            y = jax.nn.gelu(y, approximate=True)
        else:
            # Exact erf GELU in f32 (matches HF ACT2FN["gelu"]).
            y = 0.5 * y * (1.0 + lax.erf(y * _INV_SQRT2))
        o_ref[:, sl] = y.astype(o_ref.dtype)


def _vmem_limit_bytes(tm, H, I, tn, x_itemsize, w_itemsize, out_itemsize):
    bufs = (2 * tm * H * x_itemsize               # double-buffered x tiles
            + 2 * tm * I * out_itemsize           # double-buffered out tiles
            + 2 * H * I * w_itemsize              # constant weight block (2 bufs)
            + 2 * 4 * I)                          # bias
    scratch = 2 * tm * tn * 4 + (6 << 20)         # f32 chunk intermediates + margin
    return int(min(max(bufs + scratch, 16 << 20), 112 << 20))


def layoutlmv2_intermediate(hidden_states, weight, bias, *, tm=512, tn=1024,
                            compute_dtype=jnp.bfloat16, approximate_gelu=False,
                            out_dtype=None):
    """LayoutLMv2Intermediate forward: GELU(hidden_states @ weight + bias).

    hidden_states: [B, S, H]; weight: [H, I] (pre-transposed vs nn.Linear's
    [I, H]); bias: [I]. Returns [B, S, I].

    compute_dtype: dtype fed to the MXU (bf16 recommended; accumulation is
    always f32). For best HBM usage store the weight parameter in bf16 so no
    per-call cast happens; hidden_states is cast inside the kernel. Pass
    compute_dtype=None to run the matmul in the input dtype (tight numerics).
    """
    B, S, H = hidden_states.shape
    I = weight.shape[1]
    M = B * S
    if out_dtype is None:
        out_dtype = hidden_states.dtype

    tm = _choose_tm(M, tm)
    tn = _choose_tn(I, tn)
    M_pad = _round_up(M, tm)

    x2d = hidden_states.reshape(M, H)
    if M_pad != M:
        # Tail-only pad (no-op when tm divides M). Padded rows compute
        # GELU(bias) garbage that is sliced off below.
        x2d = jnp.pad(x2d, ((0, M_pad - M), (0, 0)))
    if compute_dtype is not None and weight.dtype != compute_dtype:
        # One extra HBM pass; avoided when the parameter is stored in
        # compute_dtype (see __main__).
        weight = weight.astype(compute_dtype)
    b2d = bias.astype(jnp.float32).reshape(1, I)

    kernel = functools.partial(
        _intermediate_kernel, tn=tn, compute_dtype=compute_dtype,
        approximate_gelu=approximate_gelu)

    vmem_limit = _vmem_limit_bytes(
        tm, H, I, tn,
        x_itemsize=x2d.dtype.itemsize,
        w_itemsize=weight.dtype.itemsize,
        out_itemsize=np.dtype(out_dtype).itemsize)

    out = pl.pallas_call(
        kernel,
        out_shape=jax.ShapeDtypeStruct((M_pad, I), out_dtype),
        grid_spec=pltpu.PrefetchScalarGridSpec(
            num_scalar_prefetch=0,
            grid=(M_pad // tm,),
            in_specs=[
                # Row tile of activations: DMA of tile i+1 overlaps compute on i.
                pl.BlockSpec((tm, H), lambda i: (i, 0)),
                # Full weight, constant index_map -> fetched once, VMEM-resident.
                pl.BlockSpec((H, I), lambda i: (0, 0)),
                # Bias (f32), constant across the grid.
                pl.BlockSpec((1, I), lambda i: (0, 0)),
            ],
            # Lane-dense output tile (last dim = full I, multiple of 128).
            out_specs=pl.BlockSpec((tm, I), lambda i: (i, 0)),
        ),
        compiler_params=pltpu.CompilerParams(
            dimension_semantics=("parallel",),
            vmem_limit_bytes=vmem_limit,
        ),
    )(x2d, weight, b2d)

    if M_pad != M:
        out = out[:M]
    return out.reshape(B, S, I)


def _reference(hidden_states, weight, bias):
    # Plain-JAX reference: exact (erf) GELU matches HF ACT2FN["gelu"].
    return jax.nn.gelu(
        jnp.einsum("bsh,hi->bsi", hidden_states, weight) + bias,
        approximate=False)


if __name__ == "__main__":
    key = jax.random.PRNGKey(0)
    k_x, k_w, k_b, k_x2, k_w2, k_b2 = jax.random.split(key, 6)

    # --- Small config consistent with the module's forward ------------------
    batch, seq, hidden_size, intermediate_size = 2, 8, 32, 128
    hidden_states = jax.random.normal(
        k_x, (batch, seq, hidden_size), dtype=jnp.float32)
    weight = (jax.random.normal(
        k_w, (hidden_size, intermediate_size), dtype=jnp.float32)
        * (1.0 / math.sqrt(hidden_size)))
    bias = jax.random.normal(
        k_b, (intermediate_size,), dtype=jnp.float32) * 0.02
    ref = _reference(hidden_states, weight, bias)

    # 1) Full-precision operands (compute_dtype=None) — tight check.
    out_f32 = jax.block_until_ready(
        layoutlmv2_intermediate(hidden_states, weight, bias,
                                compute_dtype=None))
    assert out_f32.shape == (batch, seq, intermediate_size)
    assert jnp.allclose(out_f32, ref, atol=1e-5, rtol=1e-5)

    # 2) bf16-fed MXU (weight pre-stored in bf16 -> no per-call cast),
    #    f32 accumulation + f32 exact-erf GELU — relaxed check.
    weight_bf16 = weight.astype(jnp.bfloat16)
    out_bf16 = jax.block_until_ready(
        layoutlmv2_intermediate(hidden_states, weight_bf16, bias))
    assert out_bf16.shape == (batch, seq, intermediate_size)
    assert jnp.allclose(out_bf16, ref, atol=5e-2, rtol=5e-2)

    # --- Medium config: exercises multi-tile grid + in-kernel N-chunking ----
    b2, s2, h2, i2 = 2, 384, 256, 512
    hs2 = jax.random.normal(k_x2, (b2, s2, h2), dtype=jnp.float32)
    w2 = (jax.random.normal(k_w2, (h2, i2), dtype=jnp.float32)
          * (1.0 / math.sqrt(h2)))
    b2_ = jax.random.normal(k_b2, (i2,), dtype=jnp.float32) * 0.02
    ref2 = _reference(hs2, w2, b2_)
    out2 = jax.block_until_ready(
        layoutlmv2_intermediate(hs2, w2.astype(jnp.bfloat16), b2_, tn=256))
    assert out2.shape == (b2, s2, i2)
    assert jnp.allclose(out2, ref2, atol=5e-2, rtol=5e-2)

    print("KERNEL_OK")
</pallas_src>

<mosaic_0001>
module attributes {stable_mosaic.version = 11 : i64} {
  func.func @_intermediate_kernel(%arg0: i32, %arg1: memref<16x32xf32, #tpu.memory_space<vmem>>, %arg2: memref<32x128xf32, #tpu.memory_space<vmem>>, %arg3: memref<1x128xf32, #tpu.memory_space<vmem>>, %arg4: memref<16x128xf32, #tpu.memory_space<vmem>>) attributes {dimension_semantics = [#tpu.dimension_semantics<parallel>], iteration_bounds = array<i64: 1>, scalar_prefetch = 0 : i64, scratch_operands = 0 : i64, tpu.core_type = #tpu.core_type<tc>, window_params = [{transform_indices = @transform_0, window_bounds = array<i64: 16, 32>}, {pipeline_mode = #tpu.pipeline_mode<synchronous>, transform_indices = @transform_1, window_bounds = array<i64: 32, 128>}, {pipeline_mode = #tpu.pipeline_mode<synchronous>, transform_indices = @transform_2, window_bounds = array<i64: 1, 128>}, {transform_indices = @transform_3, window_bounds = array<i64: 16, 128>}]} {
    %c0 = arith.constant 0 : index
    %c0_0 = arith.constant 0 : index
    %0 = vector.load %arg1[%c0, %c0_0] : memref<16x32xf32, #tpu.memory_space<vmem>>, vector<16x32xf32>
    %c0_1 = arith.constant 0 : index
    %c0_2 = arith.constant 0 : index
    %1 = vector.load %arg2[%c0_1, %c0_2] : memref<32x128xf32, #tpu.memory_space<vmem>>, vector<32x128xf32>
    %cst = arith.constant dense<0.000000e+00> : vector<16x128xf32>
    %2 = tpu.matmul %0, %1, %cst {dimension_numbers = #tpu.dot_dimension_numbers<[1], [0], [0], [1], [0, 0, 1, 1], [], []>} : vector<16x32xf32>, vector<32x128xf32>, vector<16x128xf32> -> vector<16x128xf32>
    %c0_3 = arith.constant 0 : index
    %c0_4 = arith.constant 0 : index
    %3 = vector.load %arg3[%c0_3, %c0_4] : memref<1x128xf32, #tpu.memory_space<vmem>>, vector<1x128xf32>
    %4 = vector.broadcast %3 : vector<1x128xf32> to vector<16x128xf32>
    %5 = arith.addf %2, %4 : vector<16x128xf32>
    %cst_5 = arith.constant 5.000000e-01 : f32
    %6 = vector.broadcast %cst_5 : f32 to vector<16x128xf32>
    %7 = arith.mulf %6, %5 : vector<16x128xf32>
    %cst_6 = arith.constant 0.707106769 : f32
    %8 = vector.broadcast %cst_6 : f32 to vector<16x128xf32>
    %9 = arith.mulf %5, %8 : vector<16x128xf32>
    %10 = math.erf %9 : vector<16x128xf32>
    %cst_7 = arith.constant 1.000000e+00 : f32
    %11 = vector.broadcast %cst_7 : f32 to vector<16x128xf32>
    %12 = arith.addf %11, %10 : vector<16x128xf32>
    %13 = arith.mulf %7, %12 : vector<16x128xf32>
    %c0_8 = arith.constant 0 : index
    %c0_9 = arith.constant 0 : index
    %14 = vector.load %arg4[%c0_8, %c0_9] : memref<16x128xf32, #tpu.memory_space<vmem>>, vector<16x128xf32>
    tpu.vector_store %arg4[%c0_8, %c0_9], %13 {strides = array<i32>} : memref<16x128xf32, #tpu.memory_space<vmem>>, vector<16x128xf32>,
    return
  }
  func.func @transform_0(%arg0: i32) -> (i32, i32) {
    %c0_i32 = arith.constant 0 : i32
    %c0_i32_0 = arith.constant 0 : i32
    return %arg0, %c0_i32 : i32, i32
  }
  func.func @transform_1(%arg0: i32) -> (i32, i32) {
    %c0_i32 = arith.constant 0 : i32
    %c0_i32_0 = arith.constant 0 : i32
    %c0_i32_1 = arith.constant 0 : i32
    return %c0_i32, %c0_i32_0 : i32, i32
  }
  func.func @transform_2(%arg0: i32) -> (i32, i32) {
    %c0_i32 = arith.constant 0 : i32
    %c0_i32_0 = arith.constant 0 : i32
    %c0_i32_1 = arith.constant 0 : i32
    return %c0_i32, %c0_i32_0 : i32, i32
  }
  func.func @transform_3(%arg0: i32) -> (i32, i32) {
    %c0_i32 = arith.constant 0 : i32
    %c0_i32_0 = arith.constant 0 : i32
    return %arg0, %c0_i32 : i32, i32
  }
}

</mosaic_0001>

<llo_original>
// kernel: tpu_custom_call.1
$region0: #{tpu_custom_call.1}
  #allocation0 [shape = 'u32[]', space=smem, size = 0x4, offset = 0x4, fixed_abs, tag = 'smem constant byte address 0x4 - core index']
  #allocation1 [shape = 'u32[144,128]{1,0:T(1,128)}', space=vmem, size = 0x12000, scoped, tag = 'internal scratch']
  %s0 = inlined_call_operand.hbm [shape: f32[16,32], index: 0, kind: input, shape index: {}]
  %s1 = inlined_call_operand.hbm [shape: f32[32,128], index: 1, kind: input, shape index: {}]
  %s2 = inlined_call_operand.vmem [shape: f32[1,128], index: 2, kind: input, shape index: {}]
  %s3 = inlined_call_operand.hbm [shape: f32[16,128], index: 3, kind: output, shape index: {}]
  %s4 = sld [smem:[#allocation0]]
  $region30: #{tpu_custom_call.1} parent=0
    _
  %s6 = ssub.s32 1, %s4
  %s7 = scalar_select 0, %s6, %s4
  $region1: #{tpu_custom_call.1} parent=0
    #allocation2 [shape = 'u8[8192]{0}', space=vmem, size = 0x2000, scoped, tag = 'input window, operand 0, single buffered']
    #allocation3 [shape = 's32[1]{0}', space=sflag, size = 0x4, scoped, tag = 'scoped memory for tpu_custom_call.1']
    #allocation4 [shape = 's32[1]{0}', space=sflag, size = 0x4, scoped, tag = 'scoped memory for tpu_custom_call.1']
    #allocation5 [shape = 'u8[16384]{0}', space=vmem, size = 0x4000, scoped, tag = 'input window, operand 1, single buffered']
    #allocation6 [shape = 's32[1]{0}', space=sflag, size = 0x4, scoped, tag = 'scoped memory for tpu_custom_call.1']
    #allocation7 [shape = 'u8[8192]{0}', space=vmem, size = 0x2000, scoped, tag = 'output window, operand 0, single buffered']
    %8 = vsyncpa [#allocation3], 0
    %9 = vsyncpa [#allocation6], 0
    %10 = vsyncpa [#allocation4], 0
    // Predicated region
    $region2: #{tpu_custom_call.1} parent=1 // pred_check
      _
    $region3: #{tpu_custom_call.1} parent=1 // pred_check_branch
      %12 = sbr.rel (0) target = $region5
    $region4: #{tpu_custom_call.1} parent=1 // pred_region
      %s14 = ssub.s32 256, 256
      %15 = vsyncadd [#allocation3], %s14
      %s16 = sshll.u32 [#allocation2], 4
      %s17 = int_to_ptr.vmem [resolvable:$true] %s16
      %22 = dma.hbm_to_vmem [thread:$0]  %s0, 256, %s17, [#allocation3], 128, 128, 8
    $region5: #{tpu_custom_call.1} parent=1 // pred_fallthru
      _
    // Predicated region
    $region6: #{tpu_custom_call.1} parent=1 // pred_check
      _
    $region7: #{tpu_custom_call.1} parent=1 // pred_check_branch
      %24 = sbr.rel (0) target = $region9
    $region8: #{tpu_custom_call.1} parent=1 // pred_region
      %s26 = ssub.s32 512, 512
      %27 = vsyncadd [#allocation6], %s26
      %s28 = sshll.u32 [#allocation5], 4
      %s29 = int_to_ptr.vmem [resolvable:$true] %s28
      %34 = dma.hbm_to_vmem [thread:$0]  %s1, 512, %s29, [#allocation6], 128, 128, 8
    $region9: #{tpu_custom_call.1} parent=1 // pred_fallthru
      _
    // Predicated region
    $region10: #{tpu_custom_call.1} parent=1 // pred_check
      _
    $region11: #{tpu_custom_call.1} parent=1 // pred_check_branch
      %36 = sbr.rel (0) target = $region13
    $region12: #{tpu_custom_call.1} parent=1 // pred_region
      _
    $region13: #{tpu_custom_call.1} parent=1 // pred_fallthru
      _
    // Predicated region
    $region14: #{tpu_custom_call.1} parent=1 // pred_check
      _
    $region15: #{tpu_custom_call.1} parent=1 // pred_check_branch
      %38 = sbr.rel (0) target = $region17
    $region16: #{tpu_custom_call.1} parent=1 // pred_region
      %39 = dma.done [#allocation3], 256
    $region17: #{tpu_custom_call.1} parent=1 // pred_fallthru
      _
    // Predicated region
    $region18: #{tpu_custom_call.1} parent=1 // pred_check
      _
    $region19: #{tpu_custom_call.1} parent=1 // pred_check_branch
      %41 = sbr.rel (0) target = $region21
    $region20: #{tpu_custom_call.1} parent=1 // pred_region
      %42 = dma.done [#allocation6], 512
    $region21: #{tpu_custom_call.1} parent=1 // pred_fallthru
      _
    %v43 = vld [vmem:[#allocation2] sm:$0xff]
    %v44 = vld [vmem:[#allocation2 + $0x8] sm:$0xff]
    %v45 = vld [vmem:[#allocation5] sm:$0xff]
    %v46 = vld [vmem:[#allocation5 + $0x8] sm:$0xff]
    %v47 = vld [vmem:[#allocation5 + $0x10] sm:$0xff]
    %v48 = vld [vmem:[#allocation5 + $0x18] sm:$0xff]
    %v49 = vld [vmem:[%s2] sm:$0x1]
    %v51 = vlaneseq
    %v52 = vshrl.u32 %v51, 7
    %v53 = vsub.s32 0, %v52
    %v54 = vrot.slane %v49, %v53
    %vm56 = vcmask 261120
    %v58 = vsel %vm56, %v43, 0
    %v61 = vsel %vm56, %v44, 0
    %63 = vmatprep.subr.mxu0 0.0
    %64 = vmatpush1.msra.mxu0 %v45
    %65 = vmatprep.subr.mxu0 0.0
    %66 = vmatpush1.msra.mxu0 %v46
    %67 = vmatprep.subr.mxu0 0.0
    %68 = vmatpush1.msra.mxu0 %v47
    %69 = vmatprep.subr.mxu0 0.0
    %70 = vmatpush1.msra.mxu0 %v48
    %71 = vmatprep.subr.mxu0 0.0
    %72 = vmatpush1.msra.mxu0 0.0
    %73 = vmatprep.subr.mxu0 0.0
    %74 = vmatpush1.msra.mxu0 0.0
    %75 = vmatprep.subr.mxu0 0.0
    %76 = vmatpush1.msra.mxu0 0.0
    %77 = vmatprep.subr.mxu0 0.0
    %78 = vmatpush1.msra.mxu0 0.0
    %79 = vmatprep.subr.mxu0 0.0
    %80 = vmatpush1.msra.mxu0 0.0
    %81 = vmatprep.subr.mxu0 0.0
    %82 = vmatpush1.msra.mxu0 0.0
    %83 = vmatprep.subr.mxu0 0.0
    %84 = vmatpush1.msra.mxu0 0.0
    %85 = vmatprep.subr.mxu0 0.0
    %86 = vmatpush1.msra.mxu0 0.0
    %87 = vmatprep.subr.mxu0 0.0
    %88 = vmatpush1.msra.mxu0 0.0
    %89 = vmatprep.subr.mxu0 0.0
    %90 = vmatpush1.msra.mxu0 0.0
    %91 = vmatprep.subr.mxu0 0.0
    %92 = vmatpush1.msra.mxu0 0.0
    %93 = vmatprep.subr.mxu0 0.0
    %94 = vmatpush1.msra.mxu0 0.0
    %95 = vmatprep.subr.mxu0 0.0
    %96 = vmatpush1.msra.mxu0 0.0
    %97 = vmatprep.subr.mxu0 0.0
    %98 = vmatpush1.msra.mxu0 0.0
    %99 = vmatprep.subr.mxu0 0.0
    %100 = vmatpush1.msra.mxu0 0.0
    %101 = vmatprep.subr.mxu0 0.0
    %102 = vmatpush1.msra.mxu0 0.0
    %103 = vmatprep.subr.mxu0 0.0
    %104 = vmatpush1.msra.mxu0 0.0
    %105 = vmatprep.subr.mxu0 0.0
    %106 = vmatpush1.msra.mxu0 0.0
    %107 = vmatprep.subr.mxu0 0.0
    %108 = vmatpush1.msra.mxu0 0.0
    %109 = vmatprep.subr.mxu0 0.0
    %110 = vmatpush1.msra.mxu0 0.0
    %111 = vmatprep.subr.mxu0 0.0
    %112 = vmatpush1.msra.mxu0 0.0
    %113 = vmatprep.subr.mxu0 0.0
    %114 = vmatpush1.msra.mxu0 0.0
    %115 = vmatprep.subr.mxu0 0.0
    %116 = vmatpush1.msra.mxu0 0.0
    %117 = vmatprep.subr.mxu0 0.0
    %118 = vmatpush1.msra.mxu0 0.0
    %119 = vmatprep.subr.mxu0 0.0
    %120 = vmatpush1.msra.mxu0 0.0
    %121 = vmatprep.subr.mxu0 0.0
    %122 = vmatpush1.msra.mxu0 0.0
    %123 = vmatprep.subr.mxu0 0.0
    %124 = vmatpush1.msra.mxu0 0.0
    %125 = vmatprep.subr.mxu0 0.0
    %126 = vmatpush1.msra.mxu0 0.0
    %127 = vmatprep.mubr.f32.mxu0 0.0
    %128 = vmatmul.mubr.f32.gmra.mrb[0].mxu0 %v58
    %v129 = vpop.f32.mrb[0].mxu0
    %v130 = vadd.f32 %v54, %v129
    %v131 = vpop.f32.mrb[0].mxu0
    %132 = vmatprep.mubr.f32.mxu0 0.0
    %133 = vmatmul.mubr.f32.gmra.mrb[0].mxu0 %v61
    %v134 = vpop.f32.mrb[0].mxu0
    %v135 = vadd.f32 %v54, %v134
    %v136 = vpop.f32.mrb[0].mxu0
    %137 = vdwg.mxu0
    %v138 = vmul.f32 %v130, 0.5
    %v139 = vmul.f32 %v135, 0.5
    %v140 = vmul.f32 %v130, 0.70710677
    %v141 = vmul.f32 %v135, 0.70710677
    %v142 = verf.f32.pop %v140
    %v143 = verf.f32.pop %v141
    %v144 = vadd.f32 %v142, 1.0
    %v145 = vadd.f32 %v143, 1.0
    %v146 = vmul.f32 %v138, %v144
    %v147 = vmul.f32 %v139, %v145
    %148 = vst [vmem:[#allocation7] sm:$0xff] %v146
    %149 = vst [vmem:[#allocation7 + $0x8] sm:$0xff] %v147
    // Predicated region
    $region22: #{tpu_custom_call.1} parent=1 // pred_check
      _
    $region23: #{tpu_custom_call.1} parent=1 // pred_check_branch
      %151 = sbr.rel (0) target = $region25
    $region24: #{tpu_custom_call.1} parent=1 // pred_region
      %s153 = ssub.s32 256, 256
      %154 = vsyncadd [#allocation4], %s153
      %s155 = sshll.u32 [#allocation7], 4
      %s156 = int_to_ptr.vmem [resolvable:$true] %s155
      %161 = dma.vmem_to_hbm [thread:$0]  %s156, 256, %s3, [#allocation4], 128, 128, 8
    $region25: #{tpu_custom_call.1} parent=1 // pred_fallthru
      _
    // Predicated region
    $region26: #{tpu_custom_call.1} parent=1 // pred_check
      _
    $region27: #{tpu_custom_call.1} parent=1 // pred_check_branch
      %163 = sbr.rel (0) target = $region29
    $region28: #{tpu_custom_call.1} parent=1 // pred_region
      %164 = dma.done [#allocation4], 256
    $region29: #{tpu_custom_call.1} parent=1 // pred_fallthru
      _
    %165 = vsyncpa [#allocation3], 1
    %166 = vsyncpa [#allocation6], 1
    %167 = vsyncpa [#allocation4], 1

</llo_original>
